<compile_context>
chip_gen: v6e
topology: v6e:2x2x1
jax: 0.10.0
libtpu: 0.0.40
codegen_flags: <defaults>
</compile_context>

<pallas_src>
import jax
import jax.numpy as jnp
from jax.experimental import pallas as pl
from jax.experimental.pallas import tpu as pltpu

_LANES = 128      # vreg lane width
_SUBLANES = 8     # f32 sublane count


def _round_up(x, m):
    return ((x + m - 1) // m) * m


def _logistic_kernel(wb_ref, x_ref, o_ref):
    # wb_ref: (2,) f32 in SMEM -> scalar loads, no VMEM tile padding.
    # x_ref / o_ref: (tr, 128) f32 lane-dense VMEM blocks.
    w = wb_ref[0]
    b = wb_ref[1]
    z = x_ref[...] * w + b                    # Linear(1, 1): x @ W.T + b
    # Exact sigmoid: the HBM DMA saturates long before the EUP/VALU do, so
    # the exp + divide are free and we keep full f32 accuracy.
    o_ref[...] = 1.0 / (1.0 + jnp.exp(-z))


def logistic_regression_forward(x, weight, bias, *, tile_rows=4096):
    """x: (N, 1) f32, weight: (1, 1) f32, bias: (1,) f32 -> (N, 1) f32."""
    n = x.shape[0]
    x_flat = x.reshape(-1).astype(jnp.float32)

    # --- lane-dense packing: pad N up to a sublane-aligned (rows, 128) slab ---
    rows = _round_up(pl.cdiv(n, _LANES), _SUBLANES)
    n_pad = rows * _LANES
    if n_pad != n:
        x_flat = jnp.pad(x_flat, (0, n_pad - n))
    x2d = x_flat.reshape(rows, _LANES)

    # Tile: as large as possible for HBM streaming, but clamped so the grid
    # has >=2 steps when there is enough work (both TCs busy on v7x).
    tr = min(tile_rows,
             max(_SUBLANES, _round_up(pl.cdiv(rows, 2), _SUBLANES)))
    grid = (pl.cdiv(rows, tr),)

    # Pack scalar params for the SMEM path.
    wb = jnp.concatenate(
        [weight.reshape(-1), bias.reshape(-1)]).astype(jnp.float32)

    y2d = pl.pallas_call(
        _logistic_kernel,
        out_shape=jax.ShapeDtypeStruct((rows, _LANES), jnp.float32),
        grid=grid,
        in_specs=[
            # (2,) params -> SMEM, read as scalars (no VMEM DMA stream).
            pl.BlockSpec(memory_space=pltpu.MemorySpace.SMEM),
            # Lane-dense input tiles, pipelined across the grid.
            pl.BlockSpec((tr, _LANES), lambda i: (i, 0)),
        ],
        out_specs=pl.BlockSpec((tr, _LANES), lambda i: (i, 0)),
        compiler_params=pltpu.CompilerParams(
            # Independent batch tiles: shard across TensorCores (v7x megacore).
            dimension_semantics=("parallel",),
        ),
    )(wb, x2d)

    # Drop the padded tail (holds sigmoid(b) garbage) and restore (N, 1).
    # TODO(synk): for large N, accept/return the lane-dense slab directly to
    # avoid the wrapper-side pad + slice HBM round trips.
    return y2d.reshape(-1)[:n].reshape(n, 1)


if __name__ == "__main__":
    key = jax.random.PRNGKey(0)
    kw, kb = jax.random.split(key)

    # Deterministic "trained" parameters for Linear(1, 1), torch-style init
    # (uniform in [-1/sqrt(in_features), 1/sqrt(in_features)] = [-1, 1]).
    weight = jax.random.uniform(kw, (1, 1), jnp.float32, minval=-1.0, maxval=1.0)
    bias = jax.random.uniform(kb, (1,), jnp.float32, minval=-1.0, maxval=1.0)

    # Input mirroring the script's x = np.linspace(0, 10, 200), shaped (N, 1).
    x = jnp.linspace(0.0, 10.0, 200, dtype=jnp.float32).reshape(-1, 1)

    y = logistic_regression_forward(x, weight, bias)
    y = jax.block_until_ready(y)

    # Reference check in plain JAX (exact sigmoid in the kernel -> tight tol).
    y_ref = jax.nn.sigmoid(x @ weight.T + bias)
    assert y.shape == (200, 1)
    assert jnp.allclose(y, y_ref, atol=1e-5), "mismatch vs reference"

    print("KERNEL_OK")
</pallas_src>

<mosaic_0001>
module attributes {stable_mosaic.version = 11 : i64} {
  func.func @_logistic_kernel(%arg0: i32, %arg1: memref<2xf32, #tpu.memory_space<smem>>, %arg2: memref<8x128xf32, #tpu.memory_space<vmem>>, %arg3: memref<8x128xf32, #tpu.memory_space<vmem>>) attributes {dimension_semantics = [#tpu.dimension_semantics<parallel>], iteration_bounds = array<i64: 1>, scalar_prefetch = 0 : i64, scratch_operands = 0 : i64, tpu.core_type = #tpu.core_type<tc>, window_params = [{transform_indices = @transform_0, window_bounds = array<i64: 2>}, {transform_indices = @transform_1, window_bounds = array<i64: 8, 128>}, {transform_indices = @transform_2, window_bounds = array<i64: 8, 128>}]} {
    %c0 = arith.constant 0 : index
    %0 = memref.load %arg1[%c0] : memref<2xf32, #tpu.memory_space<smem>>
    %c1 = arith.constant 1 : index
    %1 = memref.load %arg1[%c1] : memref<2xf32, #tpu.memory_space<smem>>
    %c0_0 = arith.constant 0 : index
    %c0_1 = arith.constant 0 : index
    %2 = vector.load %arg2[%c0_0, %c0_1] : memref<8x128xf32, #tpu.memory_space<vmem>>, vector<8x128xf32>
    %3 = vector.broadcast %0 : f32 to vector<8x128xf32>
    %4 = arith.mulf %2, %3 : vector<8x128xf32>
    %5 = vector.broadcast %1 : f32 to vector<8x128xf32>
    %6 = arith.addf %4, %5 : vector<8x128xf32>
    %cst = arith.constant 0.000000e+00 : f32
    %7 = vector.broadcast %cst : f32 to vector<8x128xf32>
    %8 = arith.subf %7, %6 : vector<8x128xf32>
    %9 = math.exp %8 : vector<8x128xf32>
    %cst_2 = arith.constant 1.000000e+00 : f32
    %10 = vector.broadcast %cst_2 : f32 to vector<8x128xf32>
    %11 = arith.addf %10, %9 : vector<8x128xf32>
    %cst_3 = arith.constant 1.000000e+00 : f32
    %12 = vector.broadcast %cst_3 : f32 to vector<8x128xf32>
    %13 = arith.divf %12, %11 : vector<8x128xf32>
    %c0_4 = arith.constant 0 : index
    %c0_5 = arith.constant 0 : index
    %14 = vector.load %arg3[%c0_4, %c0_5] : memref<8x128xf32, #tpu.memory_space<vmem>>, vector<8x128xf32>
    tpu.vector_store %arg3[%c0_4, %c0_5], %13 {strides = array<i32>} : memref<8x128xf32, #tpu.memory_space<vmem>>, vector<8x128xf32>,
    return
  }
  func.func @transform_0(%arg0: i32) -> i32 {
    %c0_i32 = arith.constant 0 : i32
    %c0_i32_0 = arith.constant 0 : i32
    return %c0_i32 : i32
  }
  func.func @transform_1(%arg0: i32) -> (i32, i32) {
    %c0_i32 = arith.constant 0 : i32
    %c0_i32_0 = arith.constant 0 : i32
    return %arg0, %c0_i32 : i32, i32
  }
  func.func @transform_2(%arg0: i32) -> (i32, i32) {
    %c0_i32 = arith.constant 0 : i32
    %c0_i32_0 = arith.constant 0 : i32
    return %arg0, %c0_i32 : i32, i32
  }
}

</mosaic_0001>

<llo_original>
// kernel: tpu_custom_call.1
$region0: #{tpu_custom_call.1}
  #allocation0 [shape = 'u32[]', space=smem, size = 0x4, offset = 0x4, fixed_abs, tag = 'smem constant byte address 0x4 - core index']
  #allocation1 [shape = 'u32[144,128]{1,0:T(1,128)}', space=vmem, size = 0x12000, scoped, tag = 'internal scratch']
  %s0 = inlined_call_operand.hbm [shape: f32[2], index: 0, kind: input, shape index: {}]
  %s1 = inlined_call_operand.hbm [shape: f32[8,128], index: 1, kind: input, shape index: {}]
  %s2 = inlined_call_operand.hbm [shape: f32[8,128], index: 2, kind: output, shape index: {}]
  %s3 = sld [smem:[#allocation0]]
  $region26: #{tpu_custom_call.1} parent=0
    _
  %s5 = ssub.s32 1, %s3
  %s6 = scalar_select 0, %s5, %s3
  $region1: #{tpu_custom_call.1} parent=0
    #allocation2 [shape = 'u8[512]{0}', space=smem, size = 0x200, scoped, tag = 'input window, operand 0, single buffered']
    #allocation3 [shape = 's32[1]{0}', space=sflag, size = 0x4, scoped, tag = 'scoped memory for tpu_custom_call.1']
    #allocation4 [shape = 's32[1]{0}', space=sflag, size = 0x4, scoped, tag = 'scoped memory for tpu_custom_call.1']
    #allocation5 [shape = 's32[1]{0}', space=sflag, size = 0x4, scoped, tag = 'scoped memory for tpu_custom_call.1']
    #allocation6 [shape = 'u8[4096]{0}', space=vmem, size = 0x1000, scoped, tag = 'input window, operand 1, single buffered']
    #allocation7 [shape = 'u8[4096]{0}', space=vmem, size = 0x1000, scoped, tag = 'output window, operand 0, single buffered']
    %7 = vsyncpa [#allocation5], 0
    %8 = vsyncpa [#allocation3], 0
    %9 = vsyncpa [#allocation4], 0
    // Predicated region
    $region2: #{tpu_custom_call.1} parent=1 // pred_check
      _
    $region3: #{tpu_custom_call.1} parent=1 // pred_check_branch
      %11 = sbr.rel (0) target = $region5
    $region4: #{tpu_custom_call.1} parent=1 // pred_region
      %s13 = ssub.s32 16, 16
      %14 = vsyncadd [#allocation5], %s13
      %17 = dma.hbm_to_smem %s0, 16, [#allocation2], [#allocation5]
    $region5: #{tpu_custom_call.1} parent=1 // pred_fallthru
      _
    // Predicated region
    $region6: #{tpu_custom_call.1} parent=1 // pred_check
      _
    $region7: #{tpu_custom_call.1} parent=1 // pred_check_branch
      %19 = sbr.rel (0) target = $region9
    $region8: #{tpu_custom_call.1} parent=1 // pred_region
      %s21 = ssub.s32 128, 128
      %22 = vsyncadd [#allocation3], %s21
      %s24 = sshll.u32 [#allocation6], 4
      %s25 = int_to_ptr.vmem [resolvable:$true] %s24
      %27 = dma.hbm_to_vmem [thread:$0]  %s1, 128, %s25, [#allocation3]
    $region9: #{tpu_custom_call.1} parent=1 // pred_fallthru
      _
    // Predicated region
    $region10: #{tpu_custom_call.1} parent=1 // pred_check
      _
    $region11: #{tpu_custom_call.1} parent=1 // pred_check_branch
      %29 = sbr.rel (0) target = $region13
    $region12: #{tpu_custom_call.1} parent=1 // pred_region
      %30 = dma.done [#allocation5], 16
    $region13: #{tpu_custom_call.1} parent=1 // pred_fallthru
      _
    // Predicated region
    $region14: #{tpu_custom_call.1} parent=1 // pred_check
      _
    $region15: #{tpu_custom_call.1} parent=1 // pred_check_branch
      %32 = sbr.rel (0) target = $region17
    $region16: #{tpu_custom_call.1} parent=1 // pred_region
      %33 = dma.done [#allocation3], 128
    $region17: #{tpu_custom_call.1} parent=1 // pred_fallthru
      _
    %34 = sfence
    %s35 = sld [smem:[#allocation2]]
    %s36 = sld [smem:[#allocation2 + $0x1]]
    %v37 = vld [vmem:[#allocation6] sm:$0xff]
    %v38 = vstv %s35
    %v39 = vmul.f32 %v37, %v38
    %v40 = vstv %s36
    %v41 = vadd.f32 %v39, %v40
    %v42 = vsub.f32 0.0, %v41
    %v43 = vmul.f32 %v42, 1.442695
    %v44 = vpow.pop %v43
    %v45 = vadd.f32 %v44, 1.0
    %v46 = vrcp.pop %v45
    %v47 = vmul.f32 1.0, %v46
    %48 = vst [vmem:[#allocation7] sm:$0xff] %v47
    // Predicated region
    $region18: #{tpu_custom_call.1} parent=1 // pred_check
      _
    $region19: #{tpu_custom_call.1} parent=1 // pred_check_branch
      %50 = sbr.rel (0) target = $region21
    $region20: #{tpu_custom_call.1} parent=1 // pred_region
      %s52 = ssub.s32 128, 128
      %53 = vsyncadd [#allocation4], %s52
      %s55 = sshll.u32 [#allocation7], 4
      %s56 = int_to_ptr.vmem [resolvable:$true] %s55
      %58 = dma.vmem_to_hbm [thread:$0]  %s56, 128, %s2, [#allocation4]
    $region21: #{tpu_custom_call.1} parent=1 // pred_fallthru
      _
    // Predicated region
    $region22: #{tpu_custom_call.1} parent=1 // pred_check
      _
    $region23: #{tpu_custom_call.1} parent=1 // pred_check_branch
      %60 = sbr.rel (0) target = $region25
    $region24: #{tpu_custom_call.1} parent=1 // pred_region
      %61 = dma.done [#allocation4], 128
    $region25: #{tpu_custom_call.1} parent=1 // pred_fallthru
      _
    %62 = vsyncpa [#allocation3], 1
    %63 = vsyncpa [#allocation4], 1
    %64 = vsyncpa [#allocation5], 1

</llo_original>
